<compile_context>
chip_gen: v7x
topology: tpu7x:2x2x1
jax: 0.10.0
libtpu: 0.0.40
codegen_flags: <defaults>
</compile_context>

<pallas_src>
import functools

import jax
import jax.numpy as jnp
from jax.experimental import pallas as pl
from jax.experimental.pallas import tpu as pltpu


def _loss_kernel(x_ref, lbl_ref, w1_ref, b1_ref, wc_ref, bc_ref, out_ref,
                 *, tile_b, true_b):
    # x_ref  : (tile_b, 784) f32   -- one batch tile
    # lbl_ref: (tile_b, 1)   i32
    # w1_ref : (784, 128), b1_ref: (1, 128)   -> AN.fc1
    # wc_ref : (128, 128), bc_ref: (1, 128)   -> fused fc2+fc (classes padded 10->128)
    # out_ref: (1, 8, 128) f32     -- per-tile partial sum (broadcast fill, lane-dense)
    i = pl.program_id(0)

    # AN.fc1 + ReLU  (MXU matmul, f32 accumulate)
    h = jnp.dot(x_ref[...], w1_ref[...],
                preferred_element_type=jnp.float32) + b1_ref[...]
    h = jnp.maximum(h, 0.0)                                        # (tile_b, 128)
    # TODO(synk): optional bf16 storage of X/w1 in HBM would halve the dominant
    # memory stream (kernel is HBM-bound) but changes numerics vs the f32 module.

    # fused AN.fc2 (128->1) + MSELoss.fc (1->10): one lane-dense MXU matmul
    logits = jnp.dot(h, wc_ref[...],
                     preferred_element_type=jnp.float32) + bc_ref[...]  # (tile_b, 128)

    # one-hot(label); padded classes 10..127 have logits == 0 and ohe == 0,
    # so they contribute nothing to the distance.
    classes = jax.lax.broadcasted_iota(jnp.int32, logits.shape, 1)
    ohe = (classes == lbl_ref[...]).astype(jnp.float32)            # (tile_b, 128)

    d = logits - ohe
    per_sample = jnp.sqrt(jnp.sum(d * d, axis=1, keepdims=True))   # (tile_b, 1)

    # mask rows of the (possibly padded) tail tile
    row = i * tile_b + jax.lax.broadcasted_iota(jnp.int32, (tile_b, 1), 0)
    per_sample = jnp.where(row < true_b, per_sample, 0.0)

    # one partial sum per grid step -> no carried accumulator, batch axis stays
    # "parallel" (both TensorCores on v7x); final mean is done in the wrapper.
    out_ref[...] = jnp.full(out_ref.shape, jnp.sum(per_sample), jnp.float32)


@functools.partial(jax.jit, static_argnames=("tile_b",))
def loss_wrapper_forward(x_nchw, labels, params, *, tile_b=None):
    """Forward of LossWrapper(embed=False): returns the scalar loss.

    tile_b guidance: ~256-512 on v5e, 512-1024 on v6e/v7x (default picks <=1024).
    """
    B = x_nchw.shape[0]
    x_flat = x_nchw.reshape(B, -1).astype(jnp.float32)             # (B, 784)
    K = x_flat.shape[1]                                            # 784 (kept unpadded)

    if tile_b is None:
        tile_b = max(8, pl.cdiv(B, 8) * 8) if B <= 1024 else 1024
    num_tiles = pl.cdiv(B, tile_b)
    B_pad = num_tiles * tile_b

    # ---- plain-JAX glue (fused under jit) ---------------------------------
    if B_pad == B:
        xp = x_flat                                                # no copy
        lbl = labels.astype(jnp.int32).reshape(B, 1)
    else:
        xp = jnp.zeros((B_pad, K), jnp.float32).at[:B].set(x_flat)
        lbl = jnp.zeros((B_pad, 1), jnp.int32).at[:B, 0].set(labels.astype(jnp.int32))

    w1 = params["w1"].astype(jnp.float32)                          # (784, 128)
    b1 = params["b1"].astype(jnp.float32)                          # (1, 128)

    # algebraic fusion:  logits = (sum_j h_j*w2_j + b2)*w3 + b3
    #                           =  h @ (w2^T * w3)  +  (b2*w3 + b3)
    w_comb = params["w2"].reshape(128, 1) * params["w3"]           # (128, 10)
    b_comb = params["b2"] * params["w3"] + params["b3"]            # (1, 10)
    NC = 128                                                       # classes 10 -> 128 (lane-dense)
    wc = jnp.zeros((128, NC), jnp.float32).at[:, :10].set(w_comb)
    bc = jnp.zeros((1, NC), jnp.float32).at[:, :10].set(b_comb)
    # ------------------------------------------------------------------------

    kernel = functools.partial(_loss_kernel, tile_b=tile_b, true_b=B)
    partial_sums = pl.pallas_call(
        kernel,
        grid=(num_tiles,),
        in_specs=[
            pl.BlockSpec((tile_b, K), lambda i: (i, 0)),           # x tile (pipelined)
            pl.BlockSpec((tile_b, 1), lambda i: (i, 0)),           # labels tile
            pl.BlockSpec((K, 128), lambda i: (0, 0)),              # w1 (VMEM-resident)
            pl.BlockSpec((1, 128), lambda i: (0, 0)),              # b1
            pl.BlockSpec((128, NC), lambda i: (0, 0)),             # fused weight
            pl.BlockSpec((1, NC), lambda i: (0, 0)),               # fused bias
        ],
        out_specs=pl.BlockSpec((1, 8, 128), lambda i: (i, 0, 0)),
        out_shape=jax.ShapeDtypeStruct((num_tiles, 8, 128), jnp.float32),
        compiler_params=pltpu.CompilerParams(
            dimension_semantics=("parallel",)),
    )(xp, lbl, w1, b1, wc, bc)

    # tiny final reduction, normalized by the TRUE batch size
    return jnp.sum(partial_sums[:, 0, 0]) / B


def init_params(key):
    """Deterministic init matching the PyTorch module shapes.

    fc1: Linear(784, 128)  -> w1 (784, 128), b1 (1, 128)
    fc2: Linear(128, 1)    -> w2 (1, 128),   b2 (1, 1)
    fc : Linear(1, 10)     -> w3 (1, 10),    b3 (1, 10)
    """
    k1, k2, k3, k4, k5, k6 = jax.random.split(key, 6)
    s1 = 1.0 / jnp.sqrt(784.0)
    s2 = 1.0 / jnp.sqrt(128.0)
    s3 = 1.0
    return {
        "w1": jax.random.uniform(k1, (784, 128), jnp.float32, -s1, s1),
        "b1": jax.random.uniform(k2, (1, 128), jnp.float32, -s1, s1),
        "w2": jax.random.uniform(k3, (1, 128), jnp.float32, -s2, s2),
        "b2": jax.random.uniform(k4, (1, 1), jnp.float32, -s2, s2),
        "w3": jax.random.uniform(k5, (1, 10), jnp.float32, -s3, s3),
        "b3": jax.random.uniform(k6, (1, 10), jnp.float32, -s3, s3),
    }


def _ref_loss(x_nchw, labels, params):
    """Plain-JAX reference mirroring the (unfused) PyTorch LossWrapper."""
    B = x_nchw.shape[0]
    xf = x_nchw.reshape(B, -1)
    h = jnp.maximum(xf @ params["w1"] + params["b1"], 0.0)
    feat = jnp.sum(h * params["w2"], axis=1, keepdims=True) + params["b2"]
    logits = feat * params["w3"] + params["b3"]
    ohe = jax.nn.one_hot(labels, 10, dtype=jnp.float32)
    return jnp.mean(jnp.sqrt(jnp.sum((logits - ohe) ** 2, axis=1)))


if __name__ == "__main__":
    key = jax.random.PRNGKey(0)
    kx, kl, kp, kx2, kl2 = jax.random.split(key, 5)
    params = init_params(kp)

    # case 1: small batch, single tile, no padding copies (B % 8 == 0)
    B = 8
    x = jax.random.normal(kx, (B, 1, 28, 28), dtype=jnp.float32)   # NCHW
    labels = jax.random.randint(kl, (B,), 0, 10, dtype=jnp.int32)
    loss = loss_wrapper_forward(x, labels, params)
    jax.block_until_ready(loss)
    ref = _ref_loss(x, labels, params)
    assert jnp.allclose(loss, ref, rtol=5e-3, atol=5e-3), (loss, ref)

    # case 2: multi-tile grid with a masked tail (B=20, tile_b=8 -> 3 tiles)
    B2 = 20
    x2 = jax.random.normal(kx2, (B2, 1, 28, 28), dtype=jnp.float32)
    labels2 = jax.random.randint(kl2, (B2,), 0, 10, dtype=jnp.int32)
    loss2 = loss_wrapper_forward(x2, labels2, params, tile_b=8)
    jax.block_until_ready(loss2)
    ref2 = _ref_loss(x2, labels2, params)
    assert jnp.allclose(loss2, ref2, rtol=5e-3, atol=5e-3), (loss2, ref2)

    print("KERNEL_OK")
</pallas_src>

<mosaic_0001>
module attributes {stable_mosaic.version = 11 : i64} {
  func.func @_loss_kernel(%arg0: i32, %arg1: memref<8x784xf32, #tpu.memory_space<vmem>>, %arg2: memref<8x1xi32, #tpu.memory_space<vmem>>, %arg3: memref<784x128xf32, #tpu.memory_space<vmem>>, %arg4: memref<1x128xf32, #tpu.memory_space<vmem>>, %arg5: memref<128x128xf32, #tpu.memory_space<vmem>>, %arg6: memref<1x128xf32, #tpu.memory_space<vmem>>, %arg7: memref<1x8x128xf32, #tpu.memory_space<vmem>>) attributes {dimension_semantics = [#tpu.dimension_semantics<parallel>], iteration_bounds = array<i64: 1>, scalar_prefetch = 0 : i64, scratch_operands = 0 : i64, tpu.core_type = #tpu.core_type<tc>, window_params = [{transform_indices = @transform_0, window_bounds = array<i64: 8, 784>}, {transform_indices = @transform_1, window_bounds = array<i64: 8, 1>}, {pipeline_mode = #tpu.pipeline_mode<synchronous>, transform_indices = @transform_2, window_bounds = array<i64: 784, 128>}, {pipeline_mode = #tpu.pipeline_mode<synchronous>, transform_indices = @transform_3, window_bounds = array<i64: 1, 128>}, {pipeline_mode = #tpu.pipeline_mode<synchronous>, transform_indices = @transform_4, window_bounds = array<i64: 128, 128>}, {pipeline_mode = #tpu.pipeline_mode<synchronous>, transform_indices = @transform_5, window_bounds = array<i64: 1, 128>}, {transform_indices = @transform_6, window_bounds = array<i64: 1, 8, 128>}]} {
    %c0 = arith.constant 0 : index
    %c0_0 = arith.constant 0 : index
    %0 = vector.load %arg1[%c0, %c0_0] : memref<8x784xf32, #tpu.memory_space<vmem>>, vector<8x784xf32>
    %c0_1 = arith.constant 0 : index
    %c0_2 = arith.constant 0 : index
    %1 = vector.load %arg3[%c0_1, %c0_2] : memref<784x128xf32, #tpu.memory_space<vmem>>, vector<784x128xf32>
    %cst = arith.constant dense<0.000000e+00> : vector<8x128xf32>
    %2 = tpu.matmul %0, %1, %cst {dimension_numbers = #tpu.dot_dimension_numbers<[1], [0], [0], [1], [0, 0, 1, 1], [], []>} : vector<8x784xf32>, vector<784x128xf32>, vector<8x128xf32> -> vector<8x128xf32>
    %c0_3 = arith.constant 0 : index
    %c0_4 = arith.constant 0 : index
    %3 = vector.load %arg4[%c0_3, %c0_4] : memref<1x128xf32, #tpu.memory_space<vmem>>, vector<1x128xf32>
    %4 = vector.broadcast %3 : vector<1x128xf32> to vector<8x128xf32>
    %5 = arith.addf %2, %4 : vector<8x128xf32>
    %cst_5 = arith.constant 0.000000e+00 : f32
    %6 = vector.broadcast %cst_5 : f32 to vector<8x128xf32>
    %7 = arith.maximumf %5, %6 : vector<8x128xf32>
    %c0_6 = arith.constant 0 : index
    %c0_7 = arith.constant 0 : index
    %8 = vector.load %arg5[%c0_6, %c0_7] : memref<128x128xf32, #tpu.memory_space<vmem>>, vector<128x128xf32>
    %cst_8 = arith.constant dense<0.000000e+00> : vector<8x128xf32>
    %9 = tpu.matmul %7, %8, %cst_8 {dimension_numbers = #tpu.dot_dimension_numbers<[1], [0], [0], [1], [0, 0, 1, 1], [], []>} : vector<8x128xf32>, vector<128x128xf32>, vector<8x128xf32> -> vector<8x128xf32>
    %c0_9 = arith.constant 0 : index
    %c0_10 = arith.constant 0 : index
    %10 = vector.load %arg6[%c0_9, %c0_10] : memref<1x128xf32, #tpu.memory_space<vmem>>, vector<1x128xf32>
    %11 = vector.broadcast %10 : vector<1x128xf32> to vector<8x128xf32>
    %12 = arith.addf %9, %11 : vector<8x128xf32>
    %13 = tpu.iota {dimensions = array<i32: 1>} : vector<8x128xi32>
    %c0_11 = arith.constant 0 : index
    %c0_12 = arith.constant 0 : index
    %14 = vector.load %arg2[%c0_11, %c0_12] : memref<8x1xi32, #tpu.memory_space<vmem>>, vector<8x1xi32>
    %15 = vector.broadcast %14 : vector<8x1xi32> to vector<8x128xi32>
    %16 = arith.cmpi eq, %13, %15 : vector<8x128xi32>
    %17 = arith.extui %16 : vector<8x128xi1> to vector<8x128xi32>
    %18 = arith.sitofp %17 : vector<8x128xi32> to vector<8x128xf32>
    %19 = arith.subf %12, %18 : vector<8x128xf32>
    %20 = arith.mulf %19, %19 : vector<8x128xf32>
    %cst_13 = arith.constant dense<0.000000e+00> : vector<8xf32>
    %21 = vector.multi_reduction <add>, %20, %cst_13 [1] : vector<8x128xf32> to vector<8xf32>
    %22 = vector.shape_cast %21 : vector<8xf32> to vector<8x1xf32>
    %23 = math.sqrt %22 : vector<8x1xf32>
    %c8_i32 = arith.constant 8 : i32
    %24 = arith.muli %arg0, %c8_i32 : i32
    %25 = tpu.iota {dimensions = array<i32: 0>} : vector<8x1xi32>
    %26 = vector.broadcast %24 : i32 to vector<8x1xi32>
    %27 = arith.addi %26, %25 : vector<8x1xi32>
    %c8_i32_14 = arith.constant 8 : i32
    %28 = vector.broadcast %c8_i32_14 : i32 to vector<8x1xi32>
    %29 = arith.cmpi slt, %27, %28 : vector<8x1xi32>
    %cst_15 = arith.constant 0.000000e+00 : f32
    %30 = vector.broadcast %cst_15 : f32 to vector<8x1xf32>
    %31 = arith.select %29, %23, %30 : vector<8x1xi1>, vector<8x1xf32>
    %32 = vector.shape_cast %31 : vector<8x1xf32> to vector<1x8x1xf32>
    %cst_16 = arith.constant dense<0.000000e+00> : vector<1xf32>
    %33 = vector.multi_reduction <add>, %32, %cst_16 [1, 2] : vector<1x8x1xf32> to vector<1xf32>
    %34 = vector.shape_cast %33 : vector<1xf32> to vector<1x1x1xf32>
    %35 = vector.extract %34[0, 0, 0] : f32 from vector<1x1x1xf32>
    %36 = vector.broadcast %35 : f32 to vector<1x8x128xf32>
    %c0_17 = arith.constant 0 : index
    %c0_18 = arith.constant 0 : index
    %c0_19 = arith.constant 0 : index
    %37 = vector.load %arg7[%c0_17, %c0_18, %c0_19] : memref<1x8x128xf32, #tpu.memory_space<vmem>>, vector<1x8x128xf32>
    tpu.vector_store %arg7[%c0_17, %c0_18, %c0_19], %36 {strides = array<i32>} : memref<1x8x128xf32, #tpu.memory_space<vmem>>, vector<1x8x128xf32>,
    return
  }
  func.func @transform_0(%arg0: i32) -> (i32, i32) {
    %c0_i32 = arith.constant 0 : i32
    %c0_i32_0 = arith.constant 0 : i32
    return %arg0, %c0_i32 : i32, i32
  }
  func.func @transform_1(%arg0: i32) -> (i32, i32) {
    %c0_i32 = arith.constant 0 : i32
    %c0_i32_0 = arith.constant 0 : i32
    return %arg0, %c0_i32 : i32, i32
  }
  func.func @transform_2(%arg0: i32) -> (i32, i32) {
    %c0_i32 = arith.constant 0 : i32
    %c0_i32_0 = arith.constant 0 : i32
    %c0_i32_1 = arith.constant 0 : i32
    return %c0_i32, %c0_i32_0 : i32, i32
  }
  func.func @transform_3(%arg0: i32) -> (i32, i32) {
    %c0_i32 = arith.constant 0 : i32
    %c0_i32_0 = arith.constant 0 : i32
    %c0_i32_1 = arith.constant 0 : i32
    return %c0_i32, %c0_i32_0 : i32, i32
  }
  func.func @transform_4(%arg0: i32) -> (i32, i32) {
    %c0_i32 = arith.constant 0 : i32
    %c0_i32_0 = arith.constant 0 : i32
    %c0_i32_1 = arith.constant 0 : i32
    return %c0_i32, %c0_i32_0 : i32, i32
  }
  func.func @transform_5(%arg0: i32) -> (i32, i32) {
    %c0_i32 = arith.constant 0 : i32
    %c0_i32_0 = arith.constant 0 : i32
    %c0_i32_1 = arith.constant 0 : i32
    return %c0_i32, %c0_i32_0 : i32, i32
  }
  func.func @transform_6(%arg0: i32) -> (i32, i32, i32) {
    %c0_i32 = arith.constant 0 : i32
    %c0_i32_0 = arith.constant 0 : i32
    %c0_i32_1 = arith.constant 0 : i32
    return %arg0, %c0_i32, %c0_i32_0 : i32, i32, i32
  }
}

</mosaic_0001>

<llo_original>
// kernel: loss_wrapper_forward.1
$region0: #{loss_wrapper_forward.1}
  #allocation0 [shape = 'u32[]', space=smem, size = 0x4, offset = 0x4, fixed_abs, tag = 'smem constant byte address 0x4 - core index']
  #allocation1 [shape = 'u32[144,128]{1,0:T(1,128)}', space=vmem, size = 0x12000, scoped, tag = 'internal scratch']
  %s0 = inlined_call_operand.vmem [shape: f32[8,784], index: 0, kind: input, shape index: {}]
  %s1 = inlined_call_operand.vmem [shape: s32[8,1], index: 1, kind: input, shape index: {}]
  %s2 = inlined_call_operand.vmem [shape: f32[784,128], index: 2, kind: input, shape index: {}]
  %s3 = inlined_call_operand.vmem [shape: f32[1,128], index: 3, kind: input, shape index: {}]
  %s4 = inlined_call_operand.vmem [shape: f32[128,128], index: 4, kind: input, shape index: {}]
  %s5 = inlined_call_operand.vmem [shape: f32[1,128], index: 5, kind: input, shape index: {}]
  %s6 = inlined_call_operand.vmem [shape: f32[1,8,128], index: 6, kind: output, shape index: {}]
  %s7 = sld [smem:[#allocation0]]
  $region34: #{loss_wrapper_forward.1} parent=0
    _
  %s9 = ssub.s32 1, %s7
  %s10 = scalar_select 0, %s9, %s7
  // Predicated region
  $region2: #{loss_wrapper_forward.1} parent=0 // pred_check
    _
  $region3: #{loss_wrapper_forward.1} parent=0 // pred_check_branch
    %12 = sbr.rel (0) target = $region5
  $region4: #{loss_wrapper_forward.1} parent=0 // pred_region
    _
  $region5: #{loss_wrapper_forward.1} parent=0 // pred_fallthru
    _
  // Predicated region
  $region6: #{loss_wrapper_forward.1} parent=0 // pred_check
    _
  $region7: #{loss_wrapper_forward.1} parent=0 // pred_check_branch
    %14 = sbr.rel (0) target = $region9
  $region8: #{loss_wrapper_forward.1} parent=0 // pred_region
    _
  $region9: #{loss_wrapper_forward.1} parent=0 // pred_fallthru
    _
  // Predicated region
  $region10: #{loss_wrapper_forward.1} parent=0 // pred_check
    _
  $region11: #{loss_wrapper_forward.1} parent=0 // pred_check_branch
    %16 = sbr.rel (0) target = $region13
  $region12: #{loss_wrapper_forward.1} parent=0 // pred_region
    _
  $region13: #{loss_wrapper_forward.1} parent=0 // pred_fallthru
    _
  // Predicated region
  $region14: #{loss_wrapper_forward.1} parent=0 // pred_check
    _
  $region15: #{loss_wrapper_forward.1} parent=0 // pred_check_branch
    %18 = sbr.rel (0) target = $region17
  $region16: #{loss_wrapper_forward.1} parent=0 // pred_region
    _
  $region17: #{loss_wrapper_forward.1} parent=0 // pred_fallthru
    _
  // Predicated region
  $region18: #{loss_wrapper_forward.1} parent=0 // pred_check
    _
  $region19: #{loss_wrapper_forward.1} parent=0 // pred_check_branch
    %20 = sbr.rel (0) target = $region21
  $region20: #{loss_wrapper_forward.1} parent=0 // pred_region
    _
  $region21: #{loss_wrapper_forward.1} parent=0 // pred_fallthru
    _
  // Predicated region
  $region22: #{loss_wrapper_forward.1} parent=0 // pred_check
    _
  $region23: #{loss_wrapper_forward.1} parent=0 // pred_check_branch
    %22 = sbr.rel (0) target = $region25
  $region24: #{loss_wrapper_forward.1} parent=0 // pred_region
    _
  $region25: #{loss_wrapper_forward.1} parent=0 // pred_fallthru
    _
  %v23 = vld [vmem:[%s0] sm:$0xff]
  %v24 = vld [vmem:[%s0 + $0x8] sm:$0xff]
  %v25 = vld [vmem:[%s0 + $0x10] sm:$0xff]
  %v26 = vld [vmem:[%s0 + $0x18] sm:$0xff]
  %v27 = vld [vmem:[%s0 + $0x20] sm:$0xff]
  %v28 = vld [vmem:[%s0 + $0x28] sm:$0xff]
  %v29 = vld [vmem:[%s0 + $0x30] sm:$0xff]
  %v30 = vld [vmem:[%s2] sm:$0xff]
  %v31 = vld [vmem:[%s2 + $0x8] sm:$0xff]
  %v32 = vld [vmem:[%s2 + $0x10] sm:$0xff]
  %v33 = vld [vmem:[%s2 + $0x18] sm:$0xff]
  %v34 = vld [vmem:[%s2 + $0x20] sm:$0xff]
  %v35 = vld [vmem:[%s2 + $0x28] sm:$0xff]
  %v36 = vld [vmem:[%s2 + $0x30] sm:$0xff]
  %v37 = vld [vmem:[%s2 + $0x38] sm:$0xff]
  %v38 = vld [vmem:[%s2 + $0x40] sm:$0xff]
  %v39 = vld [vmem:[%s2 + $0x48] sm:$0xff]
  %v40 = vld [vmem:[%s2 + $0x50] sm:$0xff]
  %v41 = vld [vmem:[%s2 + $0x58] sm:$0xff]
  %v42 = vld [vmem:[%s2 + $0x60] sm:$0xff]
  %v43 = vld [vmem:[%s2 + $0x68] sm:$0xff]
  %v44 = vld [vmem:[%s2 + $0x70] sm:$0xff]
  %v45 = vld [vmem:[%s2 + $0x78] sm:$0xff]
  %v46 = vld [vmem:[%s2 + $0x80] sm:$0xff]
  %v47 = vld [vmem:[%s2 + $0x88] sm:$0xff]
  %v48 = vld [vmem:[%s2 + $0x90] sm:$0xff]
  %v49 = vld [vmem:[%s2 + $0x98] sm:$0xff]
  %v50 = vld [vmem:[%s2 + $0xa0] sm:$0xff]
  %v51 = vld [vmem:[%s2 + $0xa8] sm:$0xff]
  %v52 = vld [vmem:[%s2 + $0xb0] sm:$0xff]
  %v53 = vld [vmem:[%s2 + $0xb8] sm:$0xff]
  %v54 = vld [vmem:[%s2 + $0xc0] sm:$0xff]
  %v55 = vld [vmem:[%s2 + $0xc8] sm:$0xff]
  %v56 = vld [vmem:[%s2 + $0xd0] sm:$0xff]
  %v57 = vld [vmem:[%s2 + $0xd8] sm:$0xff]
  %v58 = vld [vmem:[%s2 + $0xe0] sm:$0xff]
  %v59 = vld [vmem:[%s2 + $0xe8] sm:$0xff]
  %v60 = vld [vmem:[%s2 + $0xf0] sm:$0xff]
  %v61 = vld [vmem:[%s2 + $0xf8] sm:$0xff]
  %v62 = vld [vmem:[%s2 + $0x100] sm:$0xff]
  %v63 = vld [vmem:[%s2 + $0x108] sm:$0xff]
  %v64 = vld [vmem:[%s2 + $0x110] sm:$0xff]
  %v65 = vld [vmem:[%s2 + $0x118] sm:$0xff]
  %v66 = vld [vmem:[%s2 + $0x120] sm:$0xff]
  %v67 = vld [vmem:[%s2 + $0x128] sm:$0xff]
  %v68 = vld [vmem:[%s2 + $0x130] sm:$0xff]
  %v69 = vld [vmem:[%s2 + $0x138] sm:$0xff]
  %v70 = vld [vmem:[%s2 + $0x140] sm:$0xff]
  %v71 = vld [vmem:[%s2 + $0x148] sm:$0xff]
  %v72 = vld [vmem:[%s2 + $0x150] sm:$0xff]
  %v73 = vld [vmem:[%s2 + $0x158] sm:$0xff]
  %v74 = vld [vmem:[%s2 + $0x160] sm:$0xff]
  %v75 = vld [vmem:[%s2 + $0x168] sm:$0xff]
  %v76 = vld [vmem:[%s2 + $0x170] sm:$0xff]
  %v77 = vld [vmem:[%s2 + $0x178] sm:$0xff]
  %v78 = vld [vmem:[%s2 + $0x180] sm:$0xff]
  %v79 = vld [vmem:[%s2 + $0x188] sm:$0xff]
  %v80 = vld [vmem:[%s2 + $0x190] sm:$0xff]
  %v81 = vld [vmem:[%s2 + $0x198] sm:$0xff]
  %v82 = vld [vmem:[%s2 + $0x1a0] sm:$0xff]
  %v83 = vld [vmem:[%s2 + $0x1a8] sm:$0xff]
  %v84 = vld [vmem:[%s2 + $0x1b0] sm:$0xff]
  %v85 = vld [vmem:[%s2 + $0x1b8] sm:$0xff]
  %v86 = vld [vmem:[%s2 + $0x1c0] sm:$0xff]
  %v87 = vld [vmem:[%s2 + $0x1c8] sm:$0xff]
  %v88 = vld [vmem:[%s2 + $0x1d0] sm:$0xff]
  %v89 = vld [vmem:[%s2 + $0x1d8] sm:$0xff]
  %v90 = vld [vmem:[%s2 + $0x1e0] sm:$0xff]
  %v91 = vld [vmem:[%s2 + $0x1e8] sm:$0xff]
  %v92 = vld [vmem:[%s2 + $0x1f0] sm:$0xff]
  %v93 = vld [vmem:[%s2 + $0x1f8] sm:$0xff]
  %v94 = vld [vmem:[%s2 + $0x200] sm:$0xff]
  %v95 = vld [vmem:[%s2 + $0x208] sm:$0xff]
  %v96 = vld [vmem:[%s2 + $0x210] sm:$0xff]
  %v97 = vld [vmem:[%s2 + $0x218] sm:$0xff]
  %v98 = vld [vmem:[%s2 + $0x220] sm:$0xff]
  %v99 = vld [vmem:[%s2 + $0x228] sm:$0xff]
  %v100 = vld [vmem:[%s2 + $0x230] sm:$0xff]
  %v101 = vld [vmem:[%s2 + $0x238] sm:$0xff]
  %v102 = vld [vmem:[%s2 + $0x240] sm:$0xff]
  %v103 = vld [vmem:[%s2 + $0x248] sm:$0xff]
  %v104 = vld [vmem:[%s2 + $0x250] sm:$0xff]
  %v105 = vld [vmem:[%s2 + $0x258] sm:$0xff]
  %v106 = vld [vmem:[%s2 + $0x260] sm:$0xff]
  %v107 = vld [vmem:[%s2 + $0x268] sm:$0xff]
  %v108 = vld [vmem:[%s2 + $0x270] sm:$0xff]
  %v109 = vld [vmem:[%s2 + $0x278] sm:$0xff]
  %v110 = vld [vmem:[%s2 + $0x280] sm:$0xff]
  %v111 = vld [vmem:[%s2 + $0x288] sm:$0xff]
  %v112 = vld [vmem:[%s2 + $0x290] sm:$0xff]
  %v113 = vld [vmem:[%s2 + $0x298] sm:$0xff]
  %v114 = vld [vmem:[%s2 + $0x2a0] sm:$0xff]
  %v115 = vld [vmem:[%s2 + $0x2a8] sm:$0xff]
  %v116 = vld [vmem:[%s2 + $0x2b0] sm:$0xff]
  %v117 = vld [vmem:[%s2 + $0x2b8] sm:$0xff]
  %v118 = vld [vmem:[%s2 + $0x2c0] sm:$0xff]
  %v119 = vld [vmem:[%s2 + $0x2c8] sm:$0xff]
  %v120 = vld [vmem:[%s2 + $0x2d0] sm:$0xff]
  %v121 = vld [vmem:[%s2 + $0x2d8] sm:$0xff]
  %v122 = vld [vmem:[%s2 + $0x2e0] sm:$0xff]
  %v123 = vld [vmem:[%s2 + $0x2e8] sm:$0xff]
  %v124 = vld [vmem:[%s2 + $0x2f0] sm:$0xff]
  %v125 = vld [vmem:[%s2 + $0x2f8] sm:$0xff]
  %v126 = vld [vmem:[%s2 + $0x300] sm:$0xff]
  %v127 = vld [vmem:[%s2 + $0x308] sm:$0xff]
  %v128 = vld [vmem:[%s3] sm:$0x1]
  %v130 = vlaneseq
  %v131 = vshrl.u32 %v130, 7
  %v132 = vsub.s32 0, %v131
  %v133 = vrot.slane %v128, %v132
  %vm135 = vcmask 130048
  %v137 = vsel %vm135, %v29, 0
  %139 = vmatprep.subr.mxu0 0.0
  %140 = vmatpush1.msra.mxu0 %v30
  %141 = vmatprep.subr.mxu0 0.0
  %142 = vmatpush1.msra.mxu0 %v31
  %143 = vmatprep.subr.mxu0 0.0
  %144 = vmatpush1.msra.mxu0 %v32
  %145 = vmatprep.subr.mxu0 0.0
  %146 = vmatpush1.msra.mxu0 %v33
  %147 = vmatprep.subr.mxu0 0.0
  %148 = vmatpush1.msra.mxu0 %v34
  %149 = vmatprep.subr.mxu0 0.0
  %150 = vmatpush1.msra.mxu0 %v35
  %151 = vmatprep.subr.mxu0 0.0
  %152 = vmatpush1.msra.mxu0 %v36
  %153 = vmatprep.subr.mxu0 0.0
  %154 = vmatpush1.msra.mxu0 %v37
  %155 = vmatprep.subr.mxu0 0.0
  %156 = vmatpush1.msra.mxu0 %v38
  %157 = vmatprep.subr.mxu0 0.0
  %158 = vmatpush1.msra.mxu0 %v39
  %159 = vmatprep.subr.mxu0 0.0
  %160 = vmatpush1.msra.mxu0 %v40
  %161 = vmatprep.subr.mxu0 0.0
  %162 = vmatpush1.msra.mxu0 %v41
  %163 = vmatprep.subr.mxu0 0.0
  %164 = vmatpush1.msra.mxu0 %v42
  %165 = vmatprep.subr.mxu0 0.0
  %166 = vmatpush1.msra.mxu0 %v43
  %167 = vmatprep.subr.mxu0 0.0
  %168 = vmatpush1.msra.mxu0 %v44
  %169 = vmatprep.subr.mxu0 0.0
  %170 = vmatpush1.msra.mxu0 %v45
  %171 = vmatprep.subr.mxu0 0.0
  %172 = vmatpush1.msra.mxu0 %v46
  %173 = vmatprep.subr.mxu0 0.0
  %174 = vmatpush1.msra.mxu0 %v47
  %175 = vmatprep.subr.mxu0 0.0
  %176 = vmatpush1.msra.mxu0 %v48
  %177 = vmatprep.subr.mxu0 0.0
  %178 = vmatpush1.msra.mxu0 %v49
  %179 = vmatprep.subr.mxu0 0.0
  %180 = vmatpush1.msra.mxu0 %v50
  %181 = vmatprep.subr.mxu0 0.0
  %182 = vmatpush1.msra.mxu0 %v51
  %183 = vmatprep.subr.mxu0 0.0
  %184 = vmatpush1.msra.mxu0 %v52
  %185 = vmatprep.subr.mxu0 0.0
  %186 = vmatpush1.msra.mxu0 %v53
  %187 = vmatprep.subr.mxu0 0.0
  %188 = vmatpush1.msra.mxu0 %v54
  %189 = vmatprep.subr.mxu0 0.0
  %190 = vmatpush1.msra.mxu0 %v55
  %191 = vmatprep.subr.mxu0 0.0
  %192 = vmatpush1.msra.mxu0 %v56
  %193 = vmatprep.subr.mxu0 0.0
  %194 = vmatpush1.msra.mxu0 %v57
  %195 = vmatprep.subr.mxu0 0.0
  %196 = vmatpush1.msra.mxu0 %v58
  %197 = vmatprep.subr.mxu0 0.0
  %198 = vmatpush1.msra.mxu0 %v59
  %199 = vmatprep.subr.mxu0 0.0
  %200 = vmatpush1.msra.mxu0 %v60
  %201 = vmatprep.subr.mxu0 0.0
  %202 = vmatpush1.msra.mxu0 %v61
  %203 = vmatprep.mubr.f32.mxu0 %v24
  %204 = vmatmul.mubr.f32.gmra.mrb[0].mxu0 %v23
  %v205 = vpop.f32.mrb[0].mxu0
  %v206 = vadd.f32 %v133, %v205
  %v207 = vpop.f32.mrb[0].mxu0
  %208 = vdwg.mxu0
  %209 = vmatprep.subr.mxu0 0.0
  %210 = vmatpush1.msra.mxu0 %v62
  %211 = vmatprep.subr.mxu0 0.0
  %212 = vmatpush1.msra.mxu0 %v63
  %213 = vmatprep.subr.mxu0 0.0
  %214 = vmatpush1.msra.mxu0 %v64
  %215 = vmatprep.subr.mxu0 0.0
  %216 = vmatpush1.msra.mxu0 %v65
  %217 = vmatprep.subr.mxu0 0.0
  %218 = vmatpush1.msra.mxu0 %v66
  %219 = vmatprep.subr.mxu0 0.0
  %220 = vmatpush1.msra.mxu0 %v67
  %221 = vmatprep.subr.mxu0 0.0
  %222 = vmatpush1.msra.mxu0 %v68
  %223 = vmatprep.subr.mxu0 0.0
  %224 = vmatpush1.msra.mxu0 %v69
  %225 = vmatprep.subr.mxu0 0.0
  %226 = vmatpush1.msra.mxu0 %v70
  %227 = vmatprep.subr.mxu0 0.0
  %228 = vmatpush1.msra.mxu0 %v71
  %229 = vmatprep.subr.mxu0 0.0
  %230 = vmatpush1.msra.mxu0 %v72
  %231 = vmatprep.subr.mxu0 0.0
  %232 = vmatpush1.msra.mxu0 %v73
  %233 = vmatprep.subr.mxu0 0.0
  %234 = vmatpush1.msra.mxu0 %v74
  %235 = vmatprep.subr.mxu0 0.0
  %236 = vmatpush1.msra.mxu0 %v75
  %237 = vmatprep.subr.mxu0 0.0
  %238 = vmatpush1.msra.mxu0 %v76
  %239 = vmatprep.subr.mxu0 0.0
  %240 = vmatpush1.msra.mxu0 %v77
  %241 = vmatprep.subr.mxu0 0.0
  %242 = vmatpush1.msra.mxu0 %v78
  %243 = vmatprep.subr.mxu0 0.0
  %244 = vmatpush1.msra.mxu0 %v79
  %245 = vmatprep.subr.mxu0 0.0
  %246 = vmatpush1.msra.mxu0 %v80
  %247 = vmatprep.subr.mxu0 0.0
  %248 = vmatpush1.msra.mxu0 %v81
  %249 = vmatprep.subr.mxu0 0.0
  %250 = vmatpush1.msra.mxu0 %v82
  %251 = vmatprep.subr.mxu0 0.0
  %252 = vmatpush1.msra.mxu0 %v83
  %253 = vmatprep.subr.mxu0 0.0
  %254 = vmatpush1.msra.mxu0 %v84
  %255 = vmatprep.subr.mxu0 0.0
  %256 = vmatpush1.msra.mxu0 %v85
  %257 = vmatprep.subr.mxu0 0.0
  %258 = vmatpush1.msra.mxu0 %v86
  %259 = vmatprep.subr.mxu0 0.0
  %260 = vmatpush1.msra.mxu0 %v87
  %261 = vmatprep.subr.mxu0 0.0
  %262 = vmatpush1.msra.mxu0 %v88
  %263 = vmatprep.subr.mxu0 0.0
  %264 = vmatpush1.msra.mxu0 %v89
  %265 = vmatprep.subr.mxu0 0.0
  %266 = vmatpush1.msra.mxu0 %v90
  %267 = vmatprep.subr.mxu0 0.0
  %268 = vmatpush1.msra.mxu0 %v91
  %269 = vmatprep.subr.mxu0 0.0
  %270 = vmatpush1.msra.mxu0 %v92
  %271 = vmatprep.subr.mxu0 0.0
  %272 = vmatpush1.msra.mxu0 %v93
  %273 = vmatprep.mubr.f32.mxu0 %v26
  %274 = vmatmul.mubr.f32.gmra.mrb[0].mxu0 %v25
  %v275 = vpop.f32.mrb[0].mxu0
  %v276 = vadd.f32 %v206, %v275
  %v277 = vpop.f32.mrb[0].mxu0
  %278 = vdwg.mxu0
  %279 = vmatprep.subr.mxu0 0.0
  %280 = vmatpush1.msra.mxu0 %v94
  %281 = vmatprep.subr.mxu0 0.0
  %282 = vmatpush1.msra.mxu0 %v95
  %283 = vmatprep.subr.mxu0 0.0
  %284 = vmatpush1.msra.mxu0 %v96
  %285 = vmatprep.subr.mxu0 0.0
  %286 = vmatpush1.msra.mxu0 %v97
  %287 = vmatprep.subr.mxu0 0.0
  %288 = vmatpush1.msra.mxu0 %v98
  %289 = vmatprep.subr.mxu0 0.0
  %290 = vmatpush1.msra.mxu0 %v99
  %291 = vmatprep.subr.mxu0 0.0
  %292 = vmatpush1.msra.mxu0 %v100
  %293 = vmatprep.subr.mxu0 0.0
  %294 = vmatpush1.msra.mxu0 %v101
  %295 = vmatprep.subr.mxu0 0.0
  %296 = vmatpush1.msra.mxu0 %v102
  %297 = vmatprep.subr.mxu0 0.0
  %298 = vmatpush1.msra.mxu0 %v103
  %299 = vmatprep.subr.mxu0 0.0
  %300 = vmatpush1.msra.mxu0 %v104
  %301 = vmatprep.subr.mxu0 0.0
  %302 = vmatpush1.msra.mxu0 %v105
  %303 = vmatprep.subr.mxu0 0.0
  %304 = vmatpush1.msra.mxu0 %v106
  %305 = vmatprep.subr.mxu0 0.0
  %306 = vmatpush1.msra.mxu0 %v107
  %307 = vmatprep.subr.mxu0 0.0
  %308 = vmatpush1.msra.mxu0 %v108
  %309 = vmatprep.subr.mxu0 0.0
  %310 = vmatpush1.msra.mxu0 %v109
  %311 = vmatprep.subr.mxu0 0.0
  %312 = vmatpush1.msra.mxu0 %v110
  %313 = vmatprep.subr.mxu0 0.0
  %314 = vmatpush1.msra.mxu0 %v111
  %315 = vmatprep.subr.mxu0 0.0
  %316 = vmatpush1.msra.mxu0 %v112
  %317 = vmatprep.subr.mxu0 0.0
  %318 = vmatpush1.msra.mxu0 %v113
  %319 = vmatprep.subr.mxu0 0.0
  %320 = vmatpush1.msra.mxu0 %v114
  %321 = vmatprep.subr.mxu0 0.0
  %322 = vmatpush1.msra.mxu0 %v115
  %323 = vmatprep.subr.mxu0 0.0
  %324 = vmatpush1.msra.mxu0 %v116
  %325 = vmatprep.subr.mxu0 0.0
  %326 = vmatpush1.msra.mxu0 %v117
  %327 = vmatprep.subr.mxu0 0.0
  %328 = vmatpush1.msra.mxu0 %v118
  %329 = vmatprep.subr.mxu0 0.0
  %330 = vmatpush1.msra.mxu0 %v119
  %331 = vmatprep.subr.mxu0 0.0
  %332 = vmatpush1.msra.mxu0 %v120
  %333 = vmatprep.subr.mxu0 0.0
  %334 = vmatpush1.msra.mxu0 %v121
  %335 = vmatprep.subr.mxu0 0.0
  %336 = vmatpush1.msra.mxu0 %v122
  %337 = vmatprep.subr.mxu0 0.0
  %338 = vmatpush1.msra.mxu0 %v123
  %339 = vmatprep.subr.mxu0 0.0
  %340 = vmatpush1.msra.mxu0 %v124
  %341 = vmatprep.subr.mxu0 0.0
  %342 = vmatpush1.msra.mxu0 %v125
  %343 = vmatprep.mubr.f32.mxu0 %v28
  %344 = vmatmul.mubr.f32.gmra.mrb[0].mxu0 %v27
  %v345 = vpop.f32.mrb[0].mxu0
  %v346 = vadd.f32 %v276, %v345
  %v347 = vpop.f32.mrb[0].mxu0
  %348 = vdwg.mxu0
  %349 = vmatprep.subr.mxu0 0.0
  %350 = vmatpush1.msra.mxu0 %v126
  %351 = vmatprep.subr.mxu0 0.0
  %352 = vmatpush1.msra.mxu0 %v127
  %353 = vmatprep.subr.mxu0 0.0
  %354 = vmatpush1.msra.mxu0 0.0
  %355 = vmatprep.subr.mxu0 0.0
  %356 = vmatpush1.msra.mxu0 0.0
  %357 = vmatprep.subr.mxu0 0.0
  %358 = vmatpush1.msra.mxu0 0.0
  %359 = vmatprep.subr.mxu0 0.0
  %360 = vmatpush1.msra.mxu0 0.0
  %361 = vmatprep.subr.mxu0 0.0
  %362 = vmatpush1.msra.mxu0 0.0
  %363 = vmatprep.subr.mxu0 0.0
  %364 = vmatpush1.msra.mxu0 0.0
  %365 = vmatprep.subr.mxu0 0.0
  %366 = vmatpush1.msra.mxu0 0.0
  %367 = vmatprep.subr.mxu0 0.0
  %368 = vmatpush1.msra.mxu0 0.0
  %369 = vmatprep.subr.mxu0 0.0
  %370 = vmatpush1.msra.mxu0 0.0
  %371 = vmatprep.subr.mxu0 0.0
  %372 = vmatpush1.msra.mxu0 0.0
  %373 = vmatprep.subr.mxu0 0.0
  %374 = vmatpush1.msra.mxu0 0.0
  %375 = vmatprep.subr.mxu0 0.0
  %376 = vmatpush1.msra.mxu0 0.0
  %377 = vmatprep.subr.mxu0 0.0
  %378 = vmatpush1.msra.mxu0 0.0
  %379 = vmatprep.subr.mxu0 0.0
  %380 = vmatpush1.msra.mxu0 0.0
  %381 = vmatprep.subr.mxu0 0.0
  %382 = vmatpush1.msra.mxu0 0.0
  %383 = vmatprep.subr.mxu0 0.0
  %384 = vmatpush1.msra.mxu0 0.0
  %385 = vmatprep.subr.mxu0 0.0
  %386 = vmatpush1.msra.mxu0 0.0
  %387 = vmatprep.subr.mxu0 0.0
  %388 = vmatpush1.msra.mxu0 0.0
  %389 = vmatprep.subr.mxu0 0.0
  %390 = vmatpush1.msra.mxu0 0.0
  %391 = vmatprep.subr.mxu0 0.0
  %392 = vmatpush1.msra.mxu0 0.0
  %393 = vmatprep.subr.mxu0 0.0
  %394 = vmatpush1.msra.mxu0 0.0
  %395 = vmatprep.subr.mxu0 0.0
  %396 = vmatpush1.msra.mxu0 0.0
  %397 = vmatprep.subr.mxu0 0.0
  %398 = vmatpush1.msra.mxu0 0.0
  %399 = vmatprep.subr.mxu0 0.0
  %400 = vmatpush1.msra.mxu0 0.0
  %401 = vmatprep.subr.mxu0 0.0
  %402 = vmatpush1.msra.mxu0 0.0
  %403 = vmatprep.subr.mxu0 0.0
  %404 = vmatpush1.msra.mxu0 0.0
  %405 = vmatprep.subr.mxu0 0.0
  %406 = vmatpush1.msra.mxu0 0.0
  %407 = vmatprep.subr.mxu0 0.0
  %408 = vmatpush1.msra.mxu0 0.0
  %409 = vmatprep.subr.mxu0 0.0
  %410 = vmatpush1.msra.mxu0 0.0
  %411 = vmatprep.subr.mxu0 0.0
  %412 = vmatpush1.msra.mxu0 0.0
  %413 = vmatprep.mubr.f32.mxu0 0.0
  %414 = vmatmul.mubr.f32.gmra.mrb[0].mxu0 %v137
  %v415 = vpop.f32.mrb[0].mxu0
  %v416 = vadd.f32 %v346, %v415
  %v417 = vpop.f32.mrb[0].mxu0
  %418 = vdwg.mxu0
  %v419 = vmax.f32 %v416, 0.0
  %v420 = vld [vmem:[%s4] sm:$0xff]
  %v421 = vld [vmem:[%s4 + $0x8] sm:$0xff]
  %v422 = vld [vmem:[%s4 + $0x10] sm:$0xff]
  %v423 = vld [vmem:[%s4 + $0x18] sm:$0xff]
  %v424 = vld [vmem:[%s4 + $0x20] sm:$0xff]
  %v425 = vld [vmem:[%s4 + $0x28] sm:$0xff]
  %v426 = vld [vmem:[%s4 + $0x30] sm:$0xff]
  %v427 = vld [vmem:[%s4 + $0x38] sm:$0xff]
  %v428 = vld [vmem:[%s4 + $0x40] sm:$0xff]
  %v429 = vld [vmem:[%s4 + $0x48] sm:$0xff]
  %v430 = vld [vmem:[%s4 + $0x50] sm:$0xff]
  %v431 = vld [vmem:[%s4 + $0x58] sm:$0xff]
  %v432 = vld [vmem:[%s4 + $0x60] sm:$0xff]
  %v433 = vld [vmem:[%s4 + $0x68] sm:$0xff]
  %v434 = vld [vmem:[%s4 + $0x70] sm:$0xff]
  %v435 = vld [vmem:[%s4 + $0x78] sm:$0xff]
  %v436 = vld [vmem:[%s5] sm:$0x1]
  %v438 = vlaneseq
  %v439 = vshrl.u32 %v438, 7
  %v440 = vsub.s32 0, %v439
  %v441 = vrot.slane %v436, %v440
  %443 = vmatprep.subr.mxu0 0.0
  %444 = vmatpush1.msra.mxu0 %v420
  %445 = vmatprep.subr.mxu0 0.0
  %446 = vmatpush1.msra.mxu0 %v421
  %447 = vmatprep.subr.mxu0 0.0
  %448 = vmatpush1.msra.mxu0 %v422
  %449 = vmatprep.subr.mxu0 0.0
  %450 = vmatpush1.msra.mxu0 %v423
  %451 = vmatprep.subr.mxu0 0.0
  %452 = vmatpush1.msra.mxu0 %v424
  %453 = vmatprep.subr.mxu0 0.0
  %454 = vmatpush1.msra.mxu0 %v425
  %455 = vmatprep.subr.mxu0 0.0
  %456 = vmatpush1.msra.mxu0 %v426
  %457 = vmatprep.subr.mxu0 0.0
  %458 = vmatpush1.msra.mxu0 %v427
  %459 = vmatprep.subr.mxu0 0.0
  %460 = vmatpush1.msra.mxu0 %v428
  %461 = vmatprep.subr.mxu0 0.0
  %462 = vmatpush1.msra.mxu0 %v429
  %463 = vmatprep.subr.mxu0 0.0
  %464 = vmatpush1.msra.mxu0 %v430
  %465 = vmatprep.subr.mxu0 0.0
  %466 = vmatpush1.msra.mxu0 %v431
  %467 = vmatprep.subr.mxu0 0.0
  %468 = vmatpush1.msra.mxu0 %v432
  %469 = vmatprep.subr.mxu0 0.0
  %470 = vmatpush1.msra.mxu0 %v433
  %471 = vmatprep.subr.mxu0 0.0
  %472 = vmatpush1.msra.mxu0 %v434
  %473 = vmatprep.subr.mxu0 0.0
  %474 = vmatpush1.msra.mxu0 %v435
  %475 = vmatprep.subr.mxu0 0.0
  %476 = vmatpush1.msra.mxu0 0.0
  %477 = vmatprep.subr.mxu0 0.0
  %478 = vmatpush1.msra.mxu0 0.0
  %479 = vmatprep.subr.mxu0 0.0
  %480 = vmatpush1.msra.mxu0 0.0
  %481 = vmatprep.subr.mxu0 0.0
  %482 = vmatpush1.msra.mxu0 0.0
  %483 = vmatprep.subr.mxu0 0.0
  %484 = vmatpush1.msra.mxu0 0.0
  %485 = vmatprep.subr.mxu0 0.0
  %486 = vmatpush1.msra.mxu0 0.0
  %487 = vmatprep.subr.mxu0 0.0
  %488 = vmatpush1.msra.mxu0 0.0
  %489 = vmatprep.subr.mxu0 0.0
  %490 = vmatpush1.msra.mxu0 0.0
  %491 = vmatprep.subr.mxu0 0.0
  %492 = vmatpush1.msra.mxu0 0.0
  %493 = vmatprep.subr.mxu0 0.0
  %494 = vmatpush1.msra.mxu0 0.0
  %495 = vmatprep.subr.mxu0 0.0
  %496 = vmatpush1.msra.mxu0 0.0
  %497 = vmatprep.subr.mxu0 0.0
  %498 = vmatpush1.msra.mxu0 0.0
  %499 = vmatprep.subr.mxu0 0.0
  %500 = vmatpush1.msra.mxu0 0.0
  %501 = vmatprep.subr.mxu0 0.0
  %502 = vmatpush1.msra.mxu0 0.0
  %503 = vmatprep.subr.mxu0 0.0
  %504 = vmatpush1.msra.mxu0 0.0
  %505 = vmatprep.subr.mxu0 0.0
  %506 = vmatpush1.msra.mxu0 0.0
  %507 = vmatprep.mubr.f32.mxu0 0.0
  %508 = vmatmul.mubr.f32.gmra.mrb[0].mxu0 %v419
  %v509 = vpop.f32.mrb[0].mxu0
  %v510 = vadd.f32 %v441, %v509
  %v511 = vpop.f32.mrb[0].mxu0
  %512 = vdwg.mxu0
  %v513 = vlaneseq
  %v514 = vand.u32 %v513, 127
  %v515 = vld [vmem:[%s1] sm:$0xff]
  %516 = vset.pattern.permute.xlu0 0
  %517 = vperm.xlu0 %516, %v515
  %v518 = vpop.permute.xlu0 %517
  %vm519 = vcmp.eq.s32.totalorder %v514, %v518
  %v520 = vsel %vm519, 1, 0
  %v521 = vcvt.s32.f32 %v520
  %v522 = vsub.f32 %v510, %v521
  %v523 = vmul.f32 %v522, %v522
  %524 = vadd.xlane.f32.xlu0 %v523
  %v525 = vpop.xlane.xlu0 %524
  %v526 = vrsqrt.pop %v525
  %v527 = vmul.f32 %v525, %v526
  %vm528 = vcmp.eq.f32.partialorder %v525, inf
  %v529 = vsel %vm528, %v525, %v527
  %vm530 = vcmp.eq.f32.partialorder %v525, 0.0
  %v531 = vand.u32 %v525, 2147483648
  %v532 = vsel %vm530, %v531, %v529
  %s533 = smul.u32 0, 8
  %v534 = vlaneseq
  %v535 = vshrl.u32 %v534, 7
  %v536 = vstv %s533
  %v537 = vadd.s32 %v536, %v535
  %vm538 = vcmp.lt.s32.totalorder %v537, 8
  %v539 = vsel %vm538, %v532, 0.0
  %vm540 = vcmask 7168
  %v541 = vsel %vm540, %v539, 0.0
  %542 = vadd.xlane.f32.xlu0 %v541
  %v543 = vpop.xlane.xlu0 %542
  %v544 = vrot.slane %v543, 4
  %v545 = vadd.f32 %v543, %v544
  %v546 = vrot.slane %v545, 2
  %v547 = vadd.f32 %v545, %v546
  %v548 = vrot.slane %v547, 1
  %v549 = vadd.f32 %v547, %v548
  %s550 = vtos %v549
  %v551 = vstv %s550
  %552 = vst [vmem:[%s6] sm:$0xff] %v551
  // Predicated region
  $region26: #{loss_wrapper_forward.1} parent=0 // pred_check
    _
  $region27: #{loss_wrapper_forward.1} parent=0 // pred_check_branch
    %554 = sbr.rel (0) target = $region29
  $region28: #{loss_wrapper_forward.1} parent=0 // pred_region
    _
  $region29: #{loss_wrapper_forward.1} parent=0 // pred_fallthru
    _
  // Predicated region
  $region30: #{loss_wrapper_forward.1} parent=0 // pred_check
    _
  $region31: #{loss_wrapper_forward.1} parent=0 // pred_check_branch
    %556 = sbr.rel (0) target = $region33
  $region32: #{loss_wrapper_forward.1} parent=0 // pred_region
    _
  $region33: #{loss_wrapper_forward.1} parent=0 // pred_fallthru
    _

</llo_original>
